<compile_context>
chip_gen: v7x
topology: tpu7x:2x2x1
jax: 0.10.0
libtpu: 0.0.40
codegen_flags: <defaults>
</compile_context>

<pallas_src>
import math

import jax
import jax.numpy as jnp
from jax.experimental import pallas as pl
from jax.experimental.pallas import tpu as pltpu

EPS = 1e-5


def ori_linear_kernel(x_ref, w_ref, bn_ref, lin_ref, o_ref):
    # x_ref:   (B, tT, D)  input block
    # w_ref:   (D, O)      pre-transposed nn.Linear weight
    # bn_ref:  (tT, 2)     column 0 = gamma, column 1 = beta (per T channel)
    # lin_ref: (2, O)      row 0 = colsum(W) (= weight.sum over D), row 1 = linear bias
    # o_ref:   (B, tT*O)   lane-dense output slab (row-major identical to (B, tT, O))
    B, tT, D = x_ref.shape
    O = w_ref.shape[1]

    x = x_ref[...]                        # native dtype feeds the MXU directly
    xf = x.astype(jnp.float32)            # f32 only for the statistics accumulation

    # ---- BatchNorm1d(T) batch statistics, single pass: sum and sum-of-squares per T ----
    inv_n = 1.0 / float(B * D)
    s1 = jnp.sum(jnp.sum(xf, axis=0), axis=-1, keepdims=True)        # (tT, 1)
    s2 = jnp.sum(jnp.sum(xf * xf, axis=0), axis=-1, keepdims=True)   # (tT, 1)
    mean = s1 * inv_n
    var = jnp.maximum(s2 * inv_n - mean * mean, 0.0)   # biased variance (training mode)

    gamma = bn_ref[:, 0:1].astype(jnp.float32)          # (tT, 1)
    beta = bn_ref[:, 1:2].astype(jnp.float32)           # (tT, 1)
    scale = gamma * jax.lax.rsqrt(var + EPS)            # (tT, 1)  s_t
    shift = beta - mean * scale                         # (tT, 1)  c_t

    # ---- Linear on the raw input; BN applied as a post-matmul per-T affine ----
    y = jnp.dot(x.reshape(B * tT, D), w_ref[...],
                preferred_element_type=jnp.float32)     # (B*tT, O), one MXU stream
    y = y.reshape(B, tT, O)

    wsum = lin_ref[0:1, :].astype(jnp.float32)          # (1, O) colsum(W)
    bias = lin_ref[1:2, :].astype(jnp.float32)          # (1, O)
    shift_mat = shift * wsum + bias                     # (tT, O)

    out = y * scale[None, :, :] + shift_mat[None, :, :]  # (B, tT, O)
    # TODO(synk): stochastic dropout for p > 0 not implemented (module uses p = 0.0).
    o_ref[...] = out.reshape(B, tT * O).astype(o_ref.dtype)


def prepare_ori_linear_params(weight, bias, gamma, beta):
    """One-time parameter prep (keep outside the jit-hot path).

    weight: (O, D) torch-layout; bias: (O,); gamma/beta: (T,).
    Returns (w_t, bn_params, lin_params).
    """
    w_t = jnp.asarray(weight).T                                              # (D, O)
    bn_params = jnp.stack([jnp.asarray(gamma, jnp.float32),
                           jnp.asarray(beta, jnp.float32)], axis=1)          # (T, 2)
    lin_params = jnp.stack([jnp.asarray(weight, jnp.float32).sum(axis=1),
                            jnp.asarray(bias, jnp.float32)], axis=0)         # (2, O)
    return w_t, bn_params, lin_params


def _choose_tile_t(B, T, D, O, itemsize, vmem_budget_bytes=8 * 1024 * 1024):
    """Largest T tile fitting a conservative VMEM budget (works within v7x's 64 MiB)."""
    # Lane-dense output tiling requires (tT * O) % 128 == 0 unless tT == T.
    step = max(8, 128 // math.gcd(O, 128))
    # Double-buffered x block + f32 output block per grid step.
    per_t = 2 * B * (D * itemsize + O * 4)
    max_t = vmem_budget_bytes // max(per_t, 1)
    if max_t >= T:
        return T
    return max(step, (max_t // step) * step)


def ori_linear(x, w_t, bn_params, lin_params, *, tile_t=None,
               vmem_limit_bytes=32 * 1024 * 1024):
    """x: (B, T, D); w_t: (D, O); bn_params: (T, 2); lin_params: (2, O). Returns (B, T, O)."""
    B, T, D = x.shape
    O = w_t.shape[1]
    tT = tile_t if tile_t is not None else _choose_tile_t(B, T, D, O, x.dtype.itemsize)

    out2d = pl.pallas_call(
        ori_linear_kernel,
        out_shape=jax.ShapeDtypeStruct((B, T * O), x.dtype),
        grid_spec=pltpu.PrefetchScalarGridSpec(
            num_scalar_prefetch=0,
            grid=(pl.cdiv(T, tT),),
            in_specs=[
                pl.BlockSpec((B, tT, D), lambda i: (0, i, 0)),   # x tile over T
                pl.BlockSpec((D, O), lambda i: (0, 0)),          # W^T (resident)
                pl.BlockSpec((tT, 2), lambda i: (i, 0)),         # gamma/beta tile over T
                pl.BlockSpec((2, O), lambda i: (0, 0)),          # colsum(W)/bias (resident)
            ],
            out_specs=pl.BlockSpec((B, tT * O), lambda i: (0, i)),
        ),
        compiler_params=pltpu.CompilerParams(
            # Per-T tiles are fully independent -> shard across v7x's 2 TensorCores.
            dimension_semantics=("parallel",),
            vmem_limit_bytes=vmem_limit_bytes,
        ),
    )(x, w_t, bn_params, lin_params)

    # (B, T*O) is row-major identical to (B, T, O): this reshape is free.
    return out2d.reshape(B, T, O)


if __name__ == "__main__":
    # Shapes consistent with the module: batch=2, t=8 (BatchNorm1d channels), dim=32, outdim=4.
    B, T, D, O = 2, 8, 32, 4
    key = jax.random.PRNGKey(0)
    kx, kw = jax.random.split(key)

    x = jax.random.normal(kx, (B, T, D), dtype=jnp.float32)

    # fc1: trunc_normal_(std=1, trunc [-2, 2]) weight, zero bias (initialize_weights()).
    weight = jax.random.truncated_normal(kw, -2.0, 2.0, (O, D), dtype=jnp.float32)
    bias = jnp.zeros((O,), dtype=jnp.float32)

    # BatchNorm1d(T) affine params at init: gamma=1, beta=0.
    gamma = jnp.ones((T,), dtype=jnp.float32)
    beta = jnp.zeros((T,), dtype=jnp.float32)

    w_t, bn_params, lin_params = prepare_ori_linear_params(weight, bias, gamma, beta)
    out = ori_linear(x, w_t, bn_params, lin_params)
    out = jax.block_until_ready(out)

    # Pure-JAX reference: training-mode BatchNorm1d -> Linear -> Dropout(0.0).
    mean = jnp.mean(x, axis=(0, 2), keepdims=True)
    var = jnp.mean((x - mean) ** 2, axis=(0, 2), keepdims=True)
    xn = (x - mean) / jnp.sqrt(var + EPS) * gamma[None, :, None] + beta[None, :, None]
    ref = jnp.einsum('btd,od->bto', xn, weight) + bias[None, None, :]

    assert out.shape == (B, T, O)
    assert jnp.allclose(out, ref, atol=1e-4, rtol=1e-4), float(jnp.max(jnp.abs(out - ref)))

    print("KERNEL_OK")
</pallas_src>

<mosaic_0001>
module attributes {stable_mosaic.version = 11 : i64} {
  func.func @ori_linear_kernel(%arg0: i32, %arg1: memref<2x8x32xf32, #tpu.memory_space<vmem>>, %arg2: memref<32x4xf32, #tpu.memory_space<vmem>>, %arg3: memref<8x2xf32, #tpu.memory_space<vmem>>, %arg4: memref<2x4xf32, #tpu.memory_space<vmem>>, %arg5: memref<2x32xf32, #tpu.memory_space<vmem>>) attributes {dimension_semantics = [#tpu.dimension_semantics<parallel>], iteration_bounds = array<i64: 1>, scalar_prefetch = 0 : i64, scratch_operands = 0 : i64, tpu.core_type = #tpu.core_type<tc>, window_params = [{transform_indices = @transform_0, window_bounds = array<i64: 2, 8, 32>}, {pipeline_mode = #tpu.pipeline_mode<synchronous>, transform_indices = @transform_1, window_bounds = array<i64: 32, 4>}, {transform_indices = @transform_2, window_bounds = array<i64: 8, 2>}, {pipeline_mode = #tpu.pipeline_mode<synchronous>, transform_indices = @transform_3, window_bounds = array<i64: 2, 4>}, {transform_indices = @transform_4, window_bounds = array<i64: 2, 32>}]} {
    %c0 = arith.constant 0 : index
    %c0_0 = arith.constant 0 : index
    %c0_1 = arith.constant 0 : index
    %0 = vector.load %arg1[%c0, %c0_0, %c0_1] : memref<2x8x32xf32, #tpu.memory_space<vmem>>, vector<2x8x32xf32>
    %cst = arith.constant dense<0.000000e+00> : vector<8x32xf32>
    %1 = vector.multi_reduction <add>, %0, %cst [0] : vector<2x8x32xf32> to vector<8x32xf32>
    %cst_2 = arith.constant dense<0.000000e+00> : vector<8xf32>
    %2 = vector.multi_reduction <add>, %1, %cst_2 [1] : vector<8x32xf32> to vector<8xf32>
    %3 = vector.shape_cast %2 : vector<8xf32> to vector<8x1xf32>
    %4 = arith.mulf %0, %0 : vector<2x8x32xf32>
    %cst_3 = arith.constant dense<0.000000e+00> : vector<8x32xf32>
    %5 = vector.multi_reduction <add>, %4, %cst_3 [0] : vector<2x8x32xf32> to vector<8x32xf32>
    %cst_4 = arith.constant dense<0.000000e+00> : vector<8xf32>
    %6 = vector.multi_reduction <add>, %5, %cst_4 [1] : vector<8x32xf32> to vector<8xf32>
    %7 = vector.shape_cast %6 : vector<8xf32> to vector<8x1xf32>
    %cst_5 = arith.constant 1.562500e-02 : f32
    %8 = vector.broadcast %cst_5 : f32 to vector<8x1xf32>
    %9 = arith.mulf %3, %8 : vector<8x1xf32>
    %cst_6 = arith.constant 1.562500e-02 : f32
    %10 = vector.broadcast %cst_6 : f32 to vector<8x1xf32>
    %11 = arith.mulf %7, %10 : vector<8x1xf32>
    %12 = arith.mulf %9, %9 : vector<8x1xf32>
    %13 = arith.subf %11, %12 : vector<8x1xf32>
    %cst_7 = arith.constant 0.000000e+00 : f32
    %14 = vector.broadcast %cst_7 : f32 to vector<8x1xf32>
    %15 = arith.maximumf %13, %14 : vector<8x1xf32>
    %c0_8 = arith.constant 0 : index
    %c0_9 = arith.constant 0 : index
    %16 = vector.load %arg3[%c0_8, %c0_9] : memref<8x2xf32, #tpu.memory_space<vmem>>, vector<8x1xf32>
    %c0_10 = arith.constant 0 : index
    %c1 = arith.constant 1 : index
    %17 = vector.load %arg3[%c0_10, %c1] : memref<8x2xf32, #tpu.memory_space<vmem>>, vector<8x1xf32>
    %cst_11 = arith.constant 9.99999974E-6 : f32
    %18 = vector.broadcast %cst_11 : f32 to vector<8x1xf32>
    %19 = arith.addf %15, %18 : vector<8x1xf32>
    %20 = math.rsqrt %19 : vector<8x1xf32>
    %21 = arith.mulf %16, %20 : vector<8x1xf32>
    %22 = arith.mulf %9, %21 : vector<8x1xf32>
    %23 = arith.subf %17, %22 : vector<8x1xf32>
    %24 = vector.shape_cast %0 : vector<2x8x32xf32> to vector<16x32xf32>
    %c0_12 = arith.constant 0 : index
    %c0_13 = arith.constant 0 : index
    %25 = vector.load %arg2[%c0_12, %c0_13] : memref<32x4xf32, #tpu.memory_space<vmem>>, vector<32x4xf32>
    %cst_14 = arith.constant dense<0.000000e+00> : vector<16x4xf32>
    %26 = tpu.matmul %24, %25, %cst_14 {dimension_numbers = #tpu.dot_dimension_numbers<[1], [0], [0], [1], [0, 0, 1, 1], [], []>} : vector<16x32xf32>, vector<32x4xf32>, vector<16x4xf32> -> vector<16x4xf32>
    %27 = vector.shape_cast %26 : vector<16x4xf32> to vector<2x8x4xf32>
    %c0_15 = arith.constant 0 : index
    %c0_16 = arith.constant 0 : index
    %28 = vector.load %arg4[%c0_15, %c0_16] : memref<2x4xf32, #tpu.memory_space<vmem>>, vector<1x4xf32>
    %c1_17 = arith.constant 1 : index
    %c0_18 = arith.constant 0 : index
    %29 = vector.load %arg4[%c1_17, %c0_18] : memref<2x4xf32, #tpu.memory_space<vmem>>, vector<1x4xf32>
    %30 = vector.broadcast %23 : vector<8x1xf32> to vector<8x4xf32>
    %31 = vector.broadcast %28 : vector<1x4xf32> to vector<8x4xf32>
    %32 = arith.mulf %30, %31 : vector<8x4xf32>
    %33 = vector.broadcast %29 : vector<1x4xf32> to vector<8x4xf32>
    %34 = arith.addf %32, %33 : vector<8x4xf32>
    %35 = vector.shape_cast %21 : vector<8x1xf32> to vector<1x8x1xf32>
    %36 = vector.broadcast %35 : vector<1x8x1xf32> to vector<2x8x4xf32>
    %37 = arith.mulf %27, %36 : vector<2x8x4xf32>
    %38 = vector.shape_cast %34 : vector<8x4xf32> to vector<1x8x4xf32>
    %39 = vector.broadcast %38 : vector<1x8x4xf32> to vector<2x8x4xf32>
    %40 = arith.addf %37, %39 : vector<2x8x4xf32>
    %41 = vector.shape_cast %40 : vector<2x8x4xf32> to vector<2x32xf32>
    %c0_19 = arith.constant 0 : index
    %c0_20 = arith.constant 0 : index
    %42 = vector.load %arg5[%c0_19, %c0_20] : memref<2x32xf32, #tpu.memory_space<vmem>>, vector<2x32xf32>
    tpu.vector_store %arg5[%c0_19, %c0_20], %41 {strides = array<i32>} : memref<2x32xf32, #tpu.memory_space<vmem>>, vector<2x32xf32>,
    return
  }
  func.func @transform_0(%arg0: i32) -> (i32, i32, i32) {
    %c0_i32 = arith.constant 0 : i32
    %c0_i32_0 = arith.constant 0 : i32
    %c0_i32_1 = arith.constant 0 : i32
    return %c0_i32, %arg0, %c0_i32_0 : i32, i32, i32
  }
  func.func @transform_1(%arg0: i32) -> (i32, i32) {
    %c0_i32 = arith.constant 0 : i32
    %c0_i32_0 = arith.constant 0 : i32
    %c0_i32_1 = arith.constant 0 : i32
    return %c0_i32, %c0_i32_0 : i32, i32
  }
  func.func @transform_2(%arg0: i32) -> (i32, i32) {
    %c0_i32 = arith.constant 0 : i32
    %c0_i32_0 = arith.constant 0 : i32
    return %arg0, %c0_i32 : i32, i32
  }
  func.func @transform_3(%arg0: i32) -> (i32, i32) {
    %c0_i32 = arith.constant 0 : i32
    %c0_i32_0 = arith.constant 0 : i32
    %c0_i32_1 = arith.constant 0 : i32
    return %c0_i32, %c0_i32_0 : i32, i32
  }
  func.func @transform_4(%arg0: i32) -> (i32, i32) {
    %c0_i32 = arith.constant 0 : i32
    %c0_i32_0 = arith.constant 0 : i32
    return %c0_i32, %arg0 : i32, i32
  }
}

</mosaic_0001>

<llo_original>
// kernel: tpu_custom_call.1
$region0: #{tpu_custom_call.1}
  #allocation0 [shape = 'u32[]', space=smem, size = 0x4, offset = 0x4, fixed_abs, tag = 'smem constant byte address 0x4 - core index']
  #allocation1 [shape = 'u32[144,128]{1,0:T(1,128)}', space=vmem, size = 0x12000, scoped, tag = 'internal scratch']
  %s0 = inlined_call_operand.vmem [shape: f32[2,8,32], index: 0, kind: input, shape index: {}]
  %s1 = inlined_call_operand.vmem [shape: f32[32,4], index: 1, kind: input, shape index: {}]
  %s2 = inlined_call_operand.vmem [shape: f32[8,2], index: 2, kind: input, shape index: {}]
  %s3 = inlined_call_operand.vmem [shape: f32[2,4], index: 3, kind: input, shape index: {}]
  %s4 = inlined_call_operand.hbm [shape: f32[2,32], index: 4, kind: output, shape index: {}]
  %s5 = sld [smem:[#allocation0]]
  $region26: #{tpu_custom_call.1} parent=0
    _
  %s7 = ssub.s32 1, %s5
  %s8 = scalar_select 0, %s7, %s5
  $region1: #{tpu_custom_call.1} parent=0
    #allocation2 [shape = 'u8[1024]{0}', space=vmem, size = 0x400, scoped, tag = 'output window, operand 0, single buffered']
    #allocation3 [shape = 's32[1]{0}', space=sflag, size = 0x4, scoped, tag = 'scoped memory for tpu_custom_call.1']
    %9 = vsyncpa [#allocation3], 0
    // Predicated region
    $region2: #{tpu_custom_call.1} parent=1 // pred_check
      _
    $region3: #{tpu_custom_call.1} parent=1 // pred_check_branch
      %11 = sbr.rel (0) target = $region5
    $region4: #{tpu_custom_call.1} parent=1 // pred_region
      _
    $region5: #{tpu_custom_call.1} parent=1 // pred_fallthru
      _
    // Predicated region
    $region6: #{tpu_custom_call.1} parent=1 // pred_check
      _
    $region7: #{tpu_custom_call.1} parent=1 // pred_check_branch
      %13 = sbr.rel (0) target = $region9
    $region8: #{tpu_custom_call.1} parent=1 // pred_region
      _
    $region9: #{tpu_custom_call.1} parent=1 // pred_fallthru
      _
    // Predicated region
    $region10: #{tpu_custom_call.1} parent=1 // pred_check
      _
    $region11: #{tpu_custom_call.1} parent=1 // pred_check_branch
      %15 = sbr.rel (0) target = $region13
    $region12: #{tpu_custom_call.1} parent=1 // pred_region
      _
    $region13: #{tpu_custom_call.1} parent=1 // pred_fallthru
      _
    // Predicated region
    $region14: #{tpu_custom_call.1} parent=1 // pred_check
      _
    $region15: #{tpu_custom_call.1} parent=1 // pred_check_branch
      %17 = sbr.rel (0) target = $region17
    $region16: #{tpu_custom_call.1} parent=1 // pred_region
      _
    $region17: #{tpu_custom_call.1} parent=1 // pred_fallthru
      _
    %v18 = vld [vmem:[%s0] sm:$0xff]
    %v19 = vld [vmem:[%s0 + $0x8] sm:$0xff]
    %vm20 = vcmask 261120
    %v21 = vsel %vm20, %v18, 0.0
    %v22 = vsel %vm20, %v19, 0.0
    %v23 = vadd.f32 %v21, %v22
    %v24 = vsel %vm20, %v23, 0.0
    %25 = vadd.xlane.f32.xlu0 %v24
    %v26 = vpop.xlane.xlu0 %25
    %v27 = vmul.f32 %v18, %v18
    %v28 = vmul.f32 %v19, %v19
    %v29 = vsel %vm20, %v27, 0.0
    %v30 = vsel %vm20, %v28, 0.0
    %v31 = vadd.f32 %v29, %v30
    %v32 = vsel %vm20, %v31, 0.0
    %33 = vadd.xlane.f32.xlu0 %v32
    %v34 = vpop.xlane.xlu0 %33
    %v35 = vmul.f32 %v26, 0.015625
    %v36 = vmul.f32 %v34, 0.015625
    %v37 = vmul.f32 %v35, %v35
    %v38 = vsub.f32 %v36, %v37
    %v39 = vmax.f32 %v38, 0.0
    %v40 = vld [vmem:[%s2] sm:$0xff]
    %v41 = vadd.f32 %v39, 1e-05
    %v42 = vrsqrt.pop %v41
    %v43 = vmul.f32 %v40, %v42
    %v44 = vmul.f32 %v35, %v43
    %46 = vrot.lane.b32.xlu0 %v44, 1
    %v47 = vpop.permute.xlu0 %46
    %v49 = vsub.f32 %v40, %v47
    %v50 = vld [vmem:[%s1] sm:$0xff]
    %v51 = vld [vmem:[%s1 + $0x8] sm:$0xff]
    %v52 = vld [vmem:[%s1 + $0x10] sm:$0xff]
    %v53 = vld [vmem:[%s1 + $0x18] sm:$0xff]
    %v55 = vsel %vm20, %v18, 0
    %v58 = vsel %vm20, %v19, 0
    %60 = vmatprep.subr.mxu0 0.0
    %61 = vmatpush1.msra.mxu0 %v50
    %62 = vmatprep.subr.mxu0 0.0
    %63 = vmatpush1.msra.mxu0 %v51
    %64 = vmatprep.subr.mxu0 0.0
    %65 = vmatpush1.msra.mxu0 %v52
    %66 = vmatprep.subr.mxu0 0.0
    %67 = vmatpush1.msra.mxu0 %v53
    %68 = vmatprep.subr.mxu0 0.0
    %69 = vmatpush1.msra.mxu0 0.0
    %70 = vmatprep.subr.mxu0 0.0
    %71 = vmatpush1.msra.mxu0 0.0
    %72 = vmatprep.subr.mxu0 0.0
    %73 = vmatpush1.msra.mxu0 0.0
    %74 = vmatprep.subr.mxu0 0.0
    %75 = vmatpush1.msra.mxu0 0.0
    %76 = vmatprep.subr.mxu0 0.0
    %77 = vmatpush1.msra.mxu0 0.0
    %78 = vmatprep.subr.mxu0 0.0
    %79 = vmatpush1.msra.mxu0 0.0
    %80 = vmatprep.subr.mxu0 0.0
    %81 = vmatpush1.msra.mxu0 0.0
    %82 = vmatprep.subr.mxu0 0.0
    %83 = vmatpush1.msra.mxu0 0.0
    %84 = vmatprep.subr.mxu0 0.0
    %85 = vmatpush1.msra.mxu0 0.0
    %86 = vmatprep.subr.mxu0 0.0
    %87 = vmatpush1.msra.mxu0 0.0
    %88 = vmatprep.subr.mxu0 0.0
    %89 = vmatpush1.msra.mxu0 0.0
    %90 = vmatprep.subr.mxu0 0.0
    %91 = vmatpush1.msra.mxu0 0.0
    %92 = vmatprep.subr.mxu0 0.0
    %93 = vmatpush1.msra.mxu0 0.0
    %94 = vmatprep.subr.mxu0 0.0
    %95 = vmatpush1.msra.mxu0 0.0
    %96 = vmatprep.subr.mxu0 0.0
    %97 = vmatpush1.msra.mxu0 0.0
    %98 = vmatprep.subr.mxu0 0.0
    %99 = vmatpush1.msra.mxu0 0.0
    %100 = vmatprep.subr.mxu0 0.0
    %101 = vmatpush1.msra.mxu0 0.0
    %102 = vmatprep.subr.mxu0 0.0
    %103 = vmatpush1.msra.mxu0 0.0
    %104 = vmatprep.subr.mxu0 0.0
    %105 = vmatpush1.msra.mxu0 0.0
    %106 = vmatprep.subr.mxu0 0.0
    %107 = vmatpush1.msra.mxu0 0.0
    %108 = vmatprep.subr.mxu0 0.0
    %109 = vmatpush1.msra.mxu0 0.0
    %110 = vmatprep.subr.mxu0 0.0
    %111 = vmatpush1.msra.mxu0 0.0
    %112 = vmatprep.subr.mxu0 0.0
    %113 = vmatpush1.msra.mxu0 0.0
    %114 = vmatprep.subr.mxu0 0.0
    %115 = vmatpush1.msra.mxu0 0.0
    %116 = vmatprep.subr.mxu0 0.0
    %117 = vmatpush1.msra.mxu0 0.0
    %118 = vmatprep.subr.mxu0 0.0
    %119 = vmatpush1.msra.mxu0 0.0
    %120 = vmatprep.subr.mxu0 0.0
    %121 = vmatpush1.msra.mxu0 0.0
    %122 = vmatprep.subr.mxu0 0.0
    %123 = vmatpush1.msra.mxu0 0.0
    %124 = vmatprep.mubr.f32.mxu0 0.0
    %125 = vmatmul.mubr.f32.gmra.mrb[0].mxu0 %v55
    %v126 = vpop.f32.mrb[0].mxu0
    %v127 = vadd.f32 0.0, %v126
    %v128 = vpop.f32.mrb[0].mxu0
    %129 = vmatprep.mubr.f32.mxu0 0.0
    %130 = vmatmul.mubr.f32.gmra.mrb[0].mxu0 %v58
    %v131 = vpop.f32.mrb[0].mxu0
    %v132 = vadd.f32 0.0, %v131
    %v133 = vpop.f32.mrb[0].mxu0
    %134 = vdwg.mxu0
    %v135 = vld [vmem:[%s3] sm:$0x1]
    %v136 = vld [vmem:[%s3 + $0x1] sm:$0x1]
    %138 = vset.pattern.permute.xlu0 1
    %139 = vperm.xlu0 %138, %v49
    %v140 = vpop.permute.xlu0 %139
    %v142 = vlaneseq
    %v143 = vshrl.u32 %v142, 7
    %v144 = vsub.s32 0, %v143
    %v145 = vrot.slane %v135, %v144
    %v146 = vmul.f32 %v140, %v145
    %v147 = vlaneseq
    %v148 = vshrl.u32 %v147, 7
    %v149 = vsub.s32 0, %v148
    %v150 = vrot.slane %v136, %v149
    %v151 = vadd.f32 %v146, %v150
    %153 = vset.pattern.permute.xlu0 0
    %154 = vperm.xlu0 %153, %v43
    %v155 = vpop.permute.xlu0 %154
    %v157 = vmul.f32 %v127, %v155
    %v158 = vmul.f32 %v132, %v155
    %v159 = vadd.f32 %v157, %v151
    %v160 = vadd.f32 %v158, %v151
    %v161 = vcombine.high %v159, 0.0
    %v163 = vunpack.c.l.s4 1983009808
    %v164 = vunpack.c.0.s8 %v163
    %v165 = vlaneseq
    %v166 = vshrl.u32 %v165, 7
    %v167 = vsub.s32 %v164, %v166
    %v168 = vrot.slane %v159, %v167
    %v170 = vunpack.c.l.s4 1983009808
    %v171 = vunpack.c.0.s8 %v170
    %v172 = vlaneseq
    %v173 = vshrl.u32 %v172, 7
    %v174 = vsub.s32 %v171, %v173
    %v175 = vrot.slane %v161, %v174
    %v176 = vcombine.high %v160, 0.0
    %v178 = vunpack.c.l.s4 1983009808
    %v179 = vunpack.c.0.s8 %v178
    %v180 = vlaneseq
    %v181 = vshrl.u32 %v180, 7
    %v182 = vsub.s32 %v179, %v181
    %v183 = vrot.slane %v160, %v182
    %v185 = vunpack.c.l.s4 1983009808
    %v186 = vunpack.c.0.s8 %v185
    %v187 = vlaneseq
    %v188 = vshrl.u32 %v187, 7
    %v189 = vsub.s32 %v186, %v188
    %v190 = vrot.slane %v176, %v189
    %v191 = vcombine.low %v168, %v183
    %v192 = vcombine.high %v168, %v183
    %v194 = vunpack.c.l.s4 1934713408
    %v195 = vunpack.c.0.s8 %v194
    %v196 = vlaneseq
    %v197 = vshrl.u32 %v196, 7
    %v198 = vsub.s32 %v195, %v197
    %v199 = vrot.slane %v191, %v198
    %v201 = vunpack.c.l.s4 1934713408
    %v202 = vunpack.c.0.s8 %v201
    %v203 = vlaneseq
    %v204 = vshrl.u32 %v203, 7
    %v205 = vsub.s32 %v202, %v204
    %v206 = vrot.slane %v192, %v205
    %v207 = vcombine.low %v175, %v190
    %v208 = vcombine.high %v175, %v190
    %v210 = vunpack.c.l.s4 1934713408
    %v211 = vunpack.c.0.s8 %v210
    %v212 = vlaneseq
    %v213 = vshrl.u32 %v212, 7
    %v214 = vsub.s32 %v211, %v213
    %v215 = vrot.slane %v207, %v214
    %v217 = vunpack.c.l.s4 1934713408
    %v218 = vunpack.c.0.s8 %v217
    %v219 = vlaneseq
    %v220 = vshrl.u32 %v219, 7
    %v221 = vsub.s32 %v218, %v220
    %v222 = vrot.slane %v208, %v221
    %v223 = vcombine.high %v199, 0.0
    %v224 = vcombine.high %v206, 0.0
    %v225 = vcombine.high %v215, 0.0
    %v226 = vcombine.high %v222, 0.0
    %228 = vrot.lane.b32.xlu0 %v223, 4
    %v229 = vpop.permute.xlu0 %228
    %232 = vrot.lane.b32.xlu0 %v206, 8
    %v233 = vpop.permute.xlu0 %232
    %236 = vrot.lane.b32.xlu0 %v224, 12
    %v237 = vpop.permute.xlu0 %236
    %240 = vrot.lane.b32.xlu0 %v215, 16
    %v241 = vpop.permute.xlu0 %240
    %244 = vrot.lane.b32.xlu0 %v225, 20
    %v245 = vpop.permute.xlu0 %244
    %248 = vrot.lane.b32.xlu0 %v222, 24
    %v249 = vpop.permute.xlu0 %248
    %252 = vrot.lane.b32.xlu0 %v226, 28
    %v253 = vpop.permute.xlu0 %252
    %vm255 = vcmask 31744
    %v256 = vsel %vm255, %v199, %v229
    %vm257 = vcmask 64512
    %v258 = vsel %vm257, %v256, %v233
    %vm259 = vcmask 97280
    %v260 = vsel %vm259, %v258, %v237
    %vm261 = vcmask 130048
    %v262 = vsel %vm261, %v260, %v241
    %vm263 = vcmask 162816
    %v264 = vsel %vm263, %v262, %v245
    %vm265 = vcmask 195584
    %v266 = vsel %vm265, %v264, %v249
    %vm267 = vcmask 228352
    %v268 = vsel %vm267, %v266, %v253
    %vm269 = vcmask 254976
    %270 = vst.msk [vmem:[#allocation2] sm:$0x3] %vm269, %v268
    // Predicated region
    $region18: #{tpu_custom_call.1} parent=1 // pred_check
      _
    $region19: #{tpu_custom_call.1} parent=1 // pred_check_branch
      %272 = sbr.rel (0) target = $region21
    $region20: #{tpu_custom_call.1} parent=1 // pred_region
      %s274 = ssub.s32 32, 32
      %275 = vsyncadd [#allocation3], %s274
      %s277 = sshll.u32 [#allocation2], 4
      %s278 = int_to_ptr.vmem [resolvable:$true] %s277
      %280 = dma.vmem_to_hbm [thread:$0]  %s278, 32, %s4, [#allocation3]
    $region21: #{tpu_custom_call.1} parent=1 // pred_fallthru
      _
    // Predicated region
    $region22: #{tpu_custom_call.1} parent=1 // pred_check
      _
    $region23: #{tpu_custom_call.1} parent=1 // pred_check_branch
      %282 = sbr.rel (0) target = $region25
    $region24: #{tpu_custom_call.1} parent=1 // pred_region
      %283 = dma.done [#allocation3], 32
    $region25: #{tpu_custom_call.1} parent=1 // pred_fallthru
      _
    %284 = vsyncpa [#allocation3], 1

</llo_original>
